<compile_context>
chip_gen: v6e
topology: v6e:2x2x1
jax: 0.10.0
libtpu: 0.0.40
codegen_flags: <defaults>
</compile_context>

<pallas_src>
import functools

import jax
import jax.numpy as jnp
from jax.experimental import pallas as pl
from jax.experimental.pallas import tpu as pltpu


def _round_up(x, m):
    return ((x + m - 1) // m) * m


def _vmem_limit_bytes():
    """Chip-aware scoped-VMEM limit (leave ~24 MiB headroom for compiler scratch)."""
    try:
        cap = pltpu.get_tpu_info().vmem_capacity_bytes
    except Exception:
        cap = 64 * 1024 * 1024  # conservative (v7x per-TC)
    return int(min(max(cap - 24 * 1024 * 1024, 16 * 1024 * 1024),
                   64 * 1024 * 1024))


def _layernorm_kernel(x_ref, gamma_ref, beta_ref, o_ref, *, eps):
    # x_ref: (tile_m, H) row tile; gamma/beta: (1, H); o_ref: (tile_m, H) bf16.
    x = x_ref[...].astype(jnp.float32)
    mean = jnp.mean(x, axis=-1, keepdims=True)
    xc = x - mean
    var = jnp.mean(xc * xc, axis=-1, keepdims=True)          # biased var (PyTorch)
    inv = jax.lax.rsqrt(var + eps)
    o_ref[...] = ((xc * inv) * gamma_ref[...] + beta_ref[...]).astype(o_ref.dtype)


def _lm_head_kernel(a_ref, w_ref, o_ref):
    # a_ref: (tile_m, H) bf16 LN output; w_ref: (H, tile_v) bf16 weight slab.
    # Standard NN contraction -> MXU, f32 accumulation.
    o_ref[...] = jnp.dot(a_ref[...], w_ref[...],
                         preferred_element_type=jnp.float32).astype(o_ref.dtype)


def prepare_lm_head_weight(lm_head_weight):
    """(V, H) PyTorch-layout weight -> (H, V) bf16.

    Do this ONCE (at load/init time), not per forward call: it hoists the
    cast + transpose out of the hot path and removes the in-kernel NT
    contraction / weight relayout entirely.
    """
    return jnp.asarray(lm_head_weight).T.astype(jnp.bfloat16)


def gpt2_postprocessing(hidden_states, gamma, beta, w_hv, *,
                        eps=1e-5, tile_m=None, tile_v=None, ln_tile_m=None,
                        out_dtype=jnp.bfloat16):
    """hidden_states: (B, S, H); w_hv: (H, V) bf16 from prepare_lm_head_weight.

    Returns logits (B, S, V) in out_dtype (bf16 default; pass jnp.float32 for
    exact PyTorch-module output dtype).
    """
    B, S, H = hidden_states.shape
    Hw, V = w_hv.shape
    assert Hw == H
    M = B * S

    limit = _vmem_limit_bytes()
    out_bytes = jnp.dtype(out_dtype).itemsize

    # ---- vocab tile (lane-aligned, 128) ----
    if tile_v is None:
        tile_v = 1024
    if V <= 128:
        tile_v = V                                   # full dim (always legal)
    else:
        tile_v = min(max(128, (int(tile_v) // 128) * 128), _round_up(V, 128))

    # ---- row tile: make activations fully VMEM-resident when they fit ----
    def _ws_bytes(tm):
        return (2 * tm * H * 2                 # double-buffered bf16 activations
                + 3 * H * tile_v * 2           # up to 3 bf16 weight-slab buffers
                + 2 * tm * tile_v * out_bytes  # double-buffered output block
                + tm * tile_v * 4)             # f32 matmul accumulator

    if tile_m is None:
        tile_m = M if M * H * 2 <= 8 * 1024 * 1024 else min(512, M)
    tile_m = min(int(tile_m), M)
    if tile_m < M:
        tile_m = max(16, (tile_m // 16) * 16)        # bf16: 16-row sublane packing
    while tile_m > 16 and _ws_bytes(tile_m) > int(0.8 * limit):
        tile_m = max(16, (tile_m // 2 // 16) * 16)

    n_m = pl.cdiv(M, tile_m)
    n_v = pl.cdiv(V, tile_v)

    # ---- LayerNorm row tile (pass 1 is HBM-bound: use big tiles) ----
    if ln_tile_m is None:
        ln_tile_m = M if M <= 1024 else 1024
    ln_tile_m = min(int(ln_tile_m), M)
    if ln_tile_m < M:
        ln_tile_m = max(16, (ln_tile_m // 16) * 16)

    x2d = hidden_states.reshape(M, H)
    gamma2d = gamma.reshape(1, H).astype(jnp.float32)
    beta2d = beta.reshape(1, H).astype(jnp.float32)

    # -------------------- pass 1: LayerNorm -> bf16 --------------------
    normed = pl.pallas_call(
        functools.partial(_layernorm_kernel, eps=eps),
        out_shape=jax.ShapeDtypeStruct((M, H), jnp.bfloat16),
        grid_spec=pltpu.PrefetchScalarGridSpec(
            num_scalar_prefetch=0,
            grid=(pl.cdiv(M, ln_tile_m),),
            in_specs=[
                pl.BlockSpec((ln_tile_m, H), lambda i: (i, 0)),
                pl.BlockSpec((1, H), lambda i: (0, 0)),
                pl.BlockSpec((1, H), lambda i: (0, 0)),
            ],
            out_specs=pl.BlockSpec((ln_tile_m, H), lambda i: (i, 0)),
        ),
        compiler_params=pltpu.CompilerParams(
            dimension_semantics=("parallel",),
            vmem_limit_bytes=limit),
    )(x2d, gamma2d, beta2d)

    # ------------- pass 2: lm_head matmul (vocab-outer grid) -------------
    a_spec = pl.BlockSpec((tile_m, H), lambda j, i: (i, 0))
    w_spec = pl.BlockSpec((H, tile_v), lambda j, i: (0, j))
    if n_m > 1:
        # Weight slab only changes at j boundaries; depth-3 buffering hides the
        # slab DMA behind more than one matmul step.
        try:
            w_spec = pl.BlockSpec((H, tile_v), lambda j, i: (0, j),
                                  pipeline_mode=pl.Buffered(3))
        except TypeError:
            pass  # older BlockSpec signature: fall back to default buffering

    out2d = pl.pallas_call(
        _lm_head_kernel,
        out_shape=jax.ShapeDtypeStruct((M, V), out_dtype),
        grid_spec=pltpu.PrefetchScalarGridSpec(
            num_scalar_prefetch=0,
            grid=(n_v, n_m),
            in_specs=[a_spec, w_spec],
            out_specs=pl.BlockSpec((tile_m, tile_v), lambda j, i: (i, j)),
        ),
        compiler_params=pltpu.CompilerParams(
            # vocab parallel (megacore split stays on vocab -> weight loaded
            # once per core on v7x); rows sequential.
            dimension_semantics=("parallel", "arbitrary"),
            vmem_limit_bytes=limit),
    )(normed, w_hv)

    return out2d.reshape(B, S, V)


if __name__ == "__main__":
    eps = 1e-5
    key = jax.random.PRNGKey(0)
    k_x, k_w, k_g, k_b, k_x2 = jax.random.split(key, 5)

    def reference(hs, g, b, w_vh):
        x = hs.astype(jnp.float32)
        mu = jnp.mean(x, axis=-1, keepdims=True)
        var = jnp.mean((x - mu) ** 2, axis=-1, keepdims=True)
        normed = (x - mu) * jax.lax.rsqrt(var + eps) * g + b
        normed_bf = normed.astype(jnp.bfloat16).astype(jnp.float32)
        w_bf = w_vh.astype(jnp.bfloat16).astype(jnp.float32)
        return normed @ w_vh.T, normed_bf @ w_bf.T

    # ---- test 1: small GPT2-like config, resident-activation path, f32 out ----
    batch, seq, hidden, vocab = 2, 8, 32, 256
    hidden_states = jax.random.normal(k_x, (batch, seq, hidden), dtype=jnp.float32)
    lm_head_weight = jax.random.normal(k_w, (vocab, hidden), dtype=jnp.float32) * 0.02
    gamma = jnp.ones((hidden,), jnp.float32) + 0.01 * jax.random.normal(k_g, (hidden,))
    beta = 0.01 * jax.random.normal(k_b, (hidden,))

    w_hv = prepare_lm_head_weight(lm_head_weight)   # one-time (H, V) bf16 prep

    logits = gpt2_postprocessing(hidden_states, gamma, beta, w_hv,
                                 eps=eps, out_dtype=jnp.float32)
    logits = jax.block_until_ready(logits)

    ref_f32, ref_bf = reference(hidden_states, gamma, beta, lm_head_weight)
    assert logits.shape == (batch, seq, vocab)
    assert logits.dtype == jnp.float32
    assert jnp.max(jnp.abs(logits - ref_bf)) < 5e-3, "mismatch vs bf16-matched ref"
    assert jnp.max(jnp.abs(logits - ref_f32)) < 5e-2, "mismatch vs f32 ref"

    # ---- test 2: forced multi-tile path (partial boundary blocks, Buffered
    #              weight slabs, bf16 logits) ----
    batch2, seq2, hidden2, vocab2 = 2, 30, 32, 300
    hs2 = jax.random.normal(k_x2, (batch2, seq2, hidden2), dtype=jnp.float32)
    w2 = jax.random.normal(k_w, (vocab2, hidden2), dtype=jnp.float32) * 0.02
    g2 = jnp.ones((hidden2,), jnp.float32)
    b2 = jnp.zeros((hidden2,), jnp.float32)

    logits2 = gpt2_postprocessing(hs2, g2, b2, prepare_lm_head_weight(w2),
                                  eps=eps, tile_m=16, tile_v=128, ln_tile_m=16,
                                  out_dtype=jnp.bfloat16)
    logits2 = jax.block_until_ready(logits2)

    _, ref2_bf = reference(hs2, g2, b2, w2)
    assert logits2.shape == (batch2, seq2, vocab2)
    assert logits2.dtype == jnp.bfloat16
    assert jnp.max(jnp.abs(logits2.astype(jnp.float32) - ref2_bf)) < 2e-2, \
        "mismatch on tiled/partial-block path"

    print("KERNEL_OK")
</pallas_src>

<mosaic_0001>
module attributes {stable_mosaic.version = 11 : i64} {
  func.func @_layernorm_kernel(%arg0: i32, %arg1: memref<16x32xf32, #tpu.memory_space<vmem>>, %arg2: memref<1x32xf32, #tpu.memory_space<vmem>>, %arg3: memref<1x32xf32, #tpu.memory_space<vmem>>, %arg4: memref<16x32xbf16, #tpu.memory_space<vmem>>) attributes {dimension_semantics = [#tpu.dimension_semantics<parallel>], iteration_bounds = array<i64: 1>, scalar_prefetch = 0 : i64, scratch_operands = 0 : i64, tpu.core_type = #tpu.core_type<tc>, window_params = [{transform_indices = @transform_0, window_bounds = array<i64: 16, 32>}, {pipeline_mode = #tpu.pipeline_mode<synchronous>, transform_indices = @transform_1, window_bounds = array<i64: 1, 32>}, {pipeline_mode = #tpu.pipeline_mode<synchronous>, transform_indices = @transform_2, window_bounds = array<i64: 1, 32>}, {transform_indices = @transform_3, window_bounds = array<i64: 16, 32>}]} {
    %c0 = arith.constant 0 : index
    %c0_0 = arith.constant 0 : index
    %0 = vector.load %arg1[%c0, %c0_0] : memref<16x32xf32, #tpu.memory_space<vmem>>, vector<16x32xf32>
    %cst = arith.constant dense<0.000000e+00> : vector<16xf32>
    %1 = vector.multi_reduction <add>, %0, %cst [1] : vector<16x32xf32> to vector<16xf32>
    %2 = vector.shape_cast %1 : vector<16xf32> to vector<16x1xf32>
    %cst_1 = arith.constant 3.200000e+01 : f32
    %3 = vector.broadcast %cst_1 : f32 to vector<16x1xf32>
    %4 = arith.divf %2, %3 : vector<16x1xf32>
    %5 = vector.broadcast %4 : vector<16x1xf32> to vector<16x32xf32>
    %6 = arith.subf %0, %5 : vector<16x32xf32>
    %7 = arith.mulf %6, %6 : vector<16x32xf32>
    %cst_2 = arith.constant dense<0.000000e+00> : vector<16xf32>
    %8 = vector.multi_reduction <add>, %7, %cst_2 [1] : vector<16x32xf32> to vector<16xf32>
    %9 = vector.shape_cast %8 : vector<16xf32> to vector<16x1xf32>
    %cst_3 = arith.constant 3.200000e+01 : f32
    %10 = vector.broadcast %cst_3 : f32 to vector<16x1xf32>
    %11 = arith.divf %9, %10 : vector<16x1xf32>
    %cst_4 = arith.constant 9.99999974E-6 : f32
    %12 = vector.broadcast %cst_4 : f32 to vector<16x1xf32>
    %13 = arith.addf %11, %12 : vector<16x1xf32>
    %14 = math.rsqrt %13 : vector<16x1xf32>
    %15 = vector.broadcast %14 : vector<16x1xf32> to vector<16x32xf32>
    %16 = arith.mulf %6, %15 : vector<16x32xf32>
    %c0_5 = arith.constant 0 : index
    %c0_6 = arith.constant 0 : index
    %17 = vector.load %arg2[%c0_5, %c0_6] : memref<1x32xf32, #tpu.memory_space<vmem>>, vector<1x32xf32>
    %18 = vector.broadcast %17 : vector<1x32xf32> to vector<16x32xf32>
    %19 = arith.mulf %16, %18 : vector<16x32xf32>
    %c0_7 = arith.constant 0 : index
    %c0_8 = arith.constant 0 : index
    %20 = vector.load %arg3[%c0_7, %c0_8] : memref<1x32xf32, #tpu.memory_space<vmem>>, vector<1x32xf32>
    %21 = vector.broadcast %20 : vector<1x32xf32> to vector<16x32xf32>
    %22 = arith.addf %19, %21 : vector<16x32xf32>
    %23 = arith.truncf %22 : vector<16x32xf32> to vector<16x32xbf16>
    %c0_9 = arith.constant 0 : index
    %c0_10 = arith.constant 0 : index
    %24 = vector.load %arg4[%c0_9, %c0_10] : memref<16x32xbf16, #tpu.memory_space<vmem>>, vector<16x32xbf16>
    tpu.vector_store %arg4[%c0_9, %c0_10], %23 {strides = array<i32>} : memref<16x32xbf16, #tpu.memory_space<vmem>>, vector<16x32xbf16>,
    return
  }
  func.func @transform_0(%arg0: i32) -> (i32, i32) {
    %c0_i32 = arith.constant 0 : i32
    %c0_i32_0 = arith.constant 0 : i32
    return %arg0, %c0_i32 : i32, i32
  }
  func.func @transform_1(%arg0: i32) -> (i32, i32) {
    %c0_i32 = arith.constant 0 : i32
    %c0_i32_0 = arith.constant 0 : i32
    %c0_i32_1 = arith.constant 0 : i32
    return %c0_i32, %c0_i32_0 : i32, i32
  }
  func.func @transform_2(%arg0: i32) -> (i32, i32) {
    %c0_i32 = arith.constant 0 : i32
    %c0_i32_0 = arith.constant 0 : i32
    %c0_i32_1 = arith.constant 0 : i32
    return %c0_i32, %c0_i32_0 : i32, i32
  }
  func.func @transform_3(%arg0: i32) -> (i32, i32) {
    %c0_i32 = arith.constant 0 : i32
    %c0_i32_0 = arith.constant 0 : i32
    return %arg0, %c0_i32 : i32, i32
  }
}

</mosaic_0001>

<llo_original>
// kernel: tpu_custom_call.1
$region0: #{tpu_custom_call.1}
  #allocation0 [shape = 'u32[]', space=smem, size = 0x4, offset = 0x4, fixed_abs, tag = 'smem constant byte address 0x4 - core index']
  #allocation1 [shape = 'u32[144,128]{1,0:T(1,128)}', space=vmem, size = 0x12000, scoped, tag = 'internal scratch']
  %s0 = inlined_call_operand.hbm [shape: f32[16,32], index: 0, kind: input, shape index: {}]
  %s1 = inlined_call_operand.vmem [shape: f32[1,32], index: 1, kind: input, shape index: {}]
  %s2 = inlined_call_operand.vmem [shape: f32[1,32], index: 2, kind: input, shape index: {}]
  %s3 = inlined_call_operand.hbm [shape: bf16[16,32], index: 3, kind: output, shape index: {}]
  %s4 = sld [smem:[#allocation0]]
  $region26: #{tpu_custom_call.1} parent=0
    _
  %s6 = ssub.s32 1, %s4
  %s7 = scalar_select 0, %s6, %s4
  $region1: #{tpu_custom_call.1} parent=0
    #allocation2 [shape = 'u8[8192]{0}', space=vmem, size = 0x2000, scoped, tag = 'input window, operand 0, single buffered']
    #allocation3 [shape = 's32[1]{0}', space=sflag, size = 0x4, scoped, tag = 'scoped memory for tpu_custom_call.1']
    #allocation4 [shape = 's32[1]{0}', space=sflag, size = 0x4, scoped, tag = 'scoped memory for tpu_custom_call.1']
    #allocation5 [shape = 'u8[4096]{0}', space=vmem, size = 0x1000, scoped, tag = 'output window, operand 0, single buffered']
    %8 = vsyncpa [#allocation3], 0
    %9 = vsyncpa [#allocation4], 0
    // Predicated region
    $region2: #{tpu_custom_call.1} parent=1 // pred_check
      _
    $region3: #{tpu_custom_call.1} parent=1 // pred_check_branch
      %11 = sbr.rel (0) target = $region5
    $region4: #{tpu_custom_call.1} parent=1 // pred_region
      %s13 = ssub.s32 256, 256
      %14 = vsyncadd [#allocation3], %s13
      %s15 = sshll.u32 [#allocation2], 4
      %s16 = int_to_ptr.vmem [resolvable:$true] %s15
      %21 = dma.hbm_to_vmem [thread:$0]  %s0, 256, %s16, [#allocation3], 128, 128, 8
    $region5: #{tpu_custom_call.1} parent=1 // pred_fallthru
      _
    // Predicated region
    $region6: #{tpu_custom_call.1} parent=1 // pred_check
      _
    $region7: #{tpu_custom_call.1} parent=1 // pred_check_branch
      %23 = sbr.rel (0) target = $region9
    $region8: #{tpu_custom_call.1} parent=1 // pred_region
      _
    $region9: #{tpu_custom_call.1} parent=1 // pred_fallthru
      _
    // Predicated region
    $region10: #{tpu_custom_call.1} parent=1 // pred_check
      _
    $region11: #{tpu_custom_call.1} parent=1 // pred_check_branch
      %25 = sbr.rel (0) target = $region13
    $region12: #{tpu_custom_call.1} parent=1 // pred_region
      _
    $region13: #{tpu_custom_call.1} parent=1 // pred_fallthru
      _
    // Predicated region
    $region14: #{tpu_custom_call.1} parent=1 // pred_check
      _
    $region15: #{tpu_custom_call.1} parent=1 // pred_check_branch
      %27 = sbr.rel (0) target = $region17
    $region16: #{tpu_custom_call.1} parent=1 // pred_region
      %28 = dma.done [#allocation3], 256
    $region17: #{tpu_custom_call.1} parent=1 // pred_fallthru
      _
    %v29 = vld [vmem:[#allocation2] sm:$0xff]
    %v30 = vld [vmem:[#allocation2 + $0x8] sm:$0xff]
    %vm31 = vcmask 261120
    %v32 = vsel %vm31, %v29, 0.0
    %33 = vadd.xlane.f32.xlu0 %v32
    %v34 = vpop.xlane.xlu0 %33
    %v35 = vsel %vm31, %v30, 0.0
    %36 = vadd.xlane.f32.xlu0 %v35
    %v37 = vpop.xlane.xlu0 %36
    %v38 = vrcp.pop 32.0
    %v39 = vmul.f32 %v34, %v38
    %v40 = vmul.f32 %v37, %v38
    %v41 = vsub.f32 %v29, %v39
    %v42 = vsub.f32 %v30, %v40
    %v43 = vmul.f32 %v41, %v41
    %v44 = vmul.f32 %v42, %v42
    %v45 = vsel %vm31, %v43, 0.0
    %46 = vadd.xlane.f32.xlu0 %v45
    %v47 = vpop.xlane.xlu0 %46
    %v48 = vsel %vm31, %v44, 0.0
    %49 = vadd.xlane.f32.xlu0 %v48
    %v50 = vpop.xlane.xlu0 %49
    %v51 = vmul.f32 %v47, %v38
    %v52 = vmul.f32 %v50, %v38
    %v53 = vadd.f32 %v51, 1e-05
    %v54 = vadd.f32 %v52, 1e-05
    %v55 = vrsqrt.pop %v53
    %v56 = vrsqrt.pop %v54
    %v57 = vmul.f32 %v41, %v55
    %v58 = vmul.f32 %v42, %v56
    %v59 = vld [vmem:[%s1] sm:$0x1]
    %v61 = vlaneseq
    %v62 = vshrl.u32 %v61, 7
    %v63 = vsub.s32 0, %v62
    %v64 = vrot.slane %v59, %v63
    %v66 = vmul.f32 %v57, %v64
    %v67 = vmul.f32 %v58, %v64
    %v68 = vld [vmem:[%s2] sm:$0x1]
    %v70 = vlaneseq
    %v71 = vshrl.u32 %v70, 7
    %v72 = vsub.s32 0, %v71
    %v73 = vrot.slane %v68, %v72
    %v75 = vadd.f32 %v66, %v73
    %v76 = vadd.f32 %v67, %v73
    %v77 = vpack.c.bf16 %v76, %v75
    %v79 = vunpack.c.l.b16 %v77
    %v80 = vunpack.c.h.b16 %v77
    %v81 = vpack.c.b16 %v79, %v79
    %v82 = vpack.c.b16 %v80, %v80
    %vm85 = vcmask 257024
    %86 = vst.msk [vmem:[#allocation5] sm:$0xf] %vm85, %v81
    %87 = vst.msk [vmem:[#allocation5 + $0x4] sm:$0xf] %vm85, %v82
    // Predicated region
    $region18: #{tpu_custom_call.1} parent=1 // pred_check
      _
    $region19: #{tpu_custom_call.1} parent=1 // pred_check_branch
      %89 = sbr.rel (0) target = $region21
    $region20: #{tpu_custom_call.1} parent=1 // pred_region
      %s91 = ssub.s32 128, 128
      %92 = vsyncadd [#allocation4], %s91
      %s93 = sshll.u32 [#allocation5], 4
      %s94 = int_to_ptr.vmem [resolvable:$true] %s93
      %99 = dma.vmem_to_hbm [thread:$0]  %s94, 128, %s3, [#allocation4], 64, 64, 4
    $region21: #{tpu_custom_call.1} parent=1 // pred_fallthru
      _
    // Predicated region
    $region22: #{tpu_custom_call.1} parent=1 // pred_check
      _
    $region23: #{tpu_custom_call.1} parent=1 // pred_check_branch
      %101 = sbr.rel (0) target = $region25
    $region24: #{tpu_custom_call.1} parent=1 // pred_region
      %102 = dma.done [#allocation4], 128
    $region25: #{tpu_custom_call.1} parent=1 // pred_fallthru
      _
    %103 = vsyncpa [#allocation3], 1
    %104 = vsyncpa [#allocation4], 1

</llo_original>
